<compile_context>
chip_gen: v5e
topology: v5e:2x2
jax: 0.10.0
libtpu: 0.0.40
codegen_flags: <defaults>
</compile_context>

<pallas_src>
import jax
import jax.numpy as jnp
from jax.experimental import pallas as pl
from jax.experimental.pallas import tpu as pltpu


def _round_up(x, m):
    return ((x + m - 1) // m) * m


def _value_mlp_kernel(s_ref, *rest):
    """rest = (w0_t, b0_t, ..., w_{d-1}_t, b_{d-1}_t, w_head, b_head, out_ref).

    Activations are carried transposed as [features, batch_tile] so the lane
    (last) axis is the large batch dimension (lane-dense vregs).  Hidden
    layers: x <- relu(W_t @ x + b_t).  Head: out_row <- w_head @ x + b_head,
    a lane-dense [1, bt] row.
    """
    out_ref = rest[-1]
    param_refs = rest[:-1]
    n_hidden = (len(param_refs) - 2) // 2

    # One explicit transpose of the input tile at kernel entry (XLU vxpose);
    # everything downstream is lane-dense.
    # TODO(synk): if the upstream producer can emit s^T (or bf16 s) directly,
    # accept that layout/dtype and drop this transpose / halve the input DMA.
    x = s_ref[...].astype(jnp.float32).T          # [state_dim, bt]

    for li in range(n_hidden):
        w_t = param_refs[2 * li][...]             # (out_dim, in_dim)
        b_t = param_refs[2 * li + 1][...]         # (out_dim, 1)
        y = jnp.dot(w_t.astype(jnp.bfloat16), x.astype(jnp.bfloat16),
                    preferred_element_type=jnp.float32)
        x = jnp.maximum(y + b_t.astype(jnp.float32), 0.0)   # f32 bias + ReLU

    w_head = param_refs[-2][...]                  # (1, H)
    b_head = param_refs[-1][...]                  # (1, 1)
    head = jnp.dot(w_head.astype(jnp.bfloat16), x.astype(jnp.bfloat16),
                   preferred_element_type=jnp.float32)       # (1, bt)
    out_ref[...] = (head + b_head.astype(jnp.float32)).astype(out_ref.dtype)


def value_mlp_forward(s, weights, biases, *, batch_tile=4096):
    """Run the ValueMLP forward pass as a single Pallas kernel.

    s:        [B, state_dim]
    weights:  list of [in_dim, out_dim] arrays (len = depth + 1; last is [H, 1])
    biases:   list of [1, out_dim] arrays
    returns:  [B, 1]
    """
    B, state_dim = s.shape
    n_linear = len(weights)
    assert n_linear >= 2, "ValueMLP has at least 2 linear layers"
    hidden = weights[0].shape[1]
    batch_tile = max(256, _round_up(batch_tile, 256))

    # --- batch tile selection --------------------------------------------
    if B <= 128:
        # Tiny batch: single step, but keep the output row >= 128 lanes so
        # stores stay unmasked (and the input tile sublane/lane aligned).
        bt = 128
    else:
        # Big tiles amortize the ~0.35us/step overhead; cap so the grid keeps
        # >= 2 steps (v7x dual-TensorCore sharding via the "parallel" axis).
        bt = min(batch_tile, _round_up(_round_up(B, 256) // 2, 256))
        bt = max(bt, 256)
    B_pad = _round_up(B, bt)
    if B_pad != B:
        s = jnp.pad(s, ((0, B_pad - B), (0, 0)))
    grid = (B_pad // bt,)

    # --- specs / params ----------------------------------------------------
    # Input: tile over batch (sublanes), full feature width (lanes); the
    # kernel transposes the tile once.
    in_specs = [pl.BlockSpec((bt, state_dim), lambda i: (i, 0))]
    flat_params = []
    # Hidden-layer params, pre-transposed, VMEM-resident (constant index_map).
    for w, b in zip(weights[:-1], biases[:-1]):
        w_t = w.T                                  # (out_dim, in_dim)
        b_t = b.reshape(-1, 1)                     # (out_dim, 1)
        in_specs.append(pl.BlockSpec(w_t.shape, lambda i: (0, 0)))
        in_specs.append(pl.BlockSpec(b_t.shape, lambda i: (0, 0)))
        flat_params.extend([w_t, b_t])
    # Head params: [H, 1] stored as [1, H]; bias as [1, 1].
    w_head = weights[-1].T                         # (1, H)
    b_head = biases[-1].reshape(1, 1)              # (1, 1)
    in_specs.append(pl.BlockSpec(w_head.shape, lambda i: (0, 0)))
    in_specs.append(pl.BlockSpec(b_head.shape, lambda i: (0, 0)))
    flat_params.extend([w_head, b_head])

    # Lane-dense output: [1, B_pad], one [1, bt] row per grid step.
    out_spec = pl.BlockSpec((1, bt), lambda i: (0, i))

    flops = 2 * B_pad * (state_dim * hidden
                         + (n_linear - 2) * hidden * hidden
                         + hidden)
    param_bytes = sum(int(p.size) * p.dtype.itemsize for p in flat_params)
    bytes_accessed = (int(s.size) * s.dtype.itemsize          # input DMA
                      + B_pad * jnp.dtype(s.dtype).itemsize   # output row
                      + param_bytes)                          # weights/biases

    out = pl.pallas_call(
        _value_mlp_kernel,
        out_shape=jax.ShapeDtypeStruct((1, B_pad), s.dtype),
        grid_spec=pltpu.PrefetchScalarGridSpec(
            num_scalar_prefetch=0,
            grid=grid,
            in_specs=in_specs,
            out_specs=out_spec,
        ),
        compiler_params=pltpu.CompilerParams(
            dimension_semantics=("parallel",)),
        cost_estimate=pl.CostEstimate(
            flops=flops, transcendentals=0, bytes_accessed=bytes_accessed),
    )(s, *flat_params)

    # Back to the PyTorch [B, 1] layout (row-major reshape preserves order).
    return out.reshape(B_pad, 1)[:B]


def init_value_mlp_params(key, state_dim, hidden_dim, depth):
    """Deterministic synthetic init (uniform, like nn.Linear's default range)."""
    dims = [state_dim] + [hidden_dim] * depth + [1]
    weights, biases = [], []
    for li in range(len(dims) - 1):
        fan_in, fan_out = dims[li], dims[li + 1]
        key, wk, bk = jax.random.split(key, 3)
        bound = 1.0 / jnp.sqrt(fan_in)
        w = jax.random.uniform(wk, (fan_in, fan_out), jnp.float32, -bound, bound)
        b = jax.random.uniform(bk, (1, fan_out), jnp.float32, -bound, bound)
        weights.append(w)
        biases.append(b)
    return weights, biases


def value_mlp_reference(s, weights, biases):
    x = s.astype(jnp.float32)
    n = len(weights)
    for li, (w, b) in enumerate(zip(weights, biases)):
        x = x @ w + b
        if li < n - 1:
            x = jnp.maximum(x, 0.0)
    return x.astype(s.dtype)


if __name__ == "__main__":
    # Shapes consistent with the module: args.state_dim=32,
    # args.v_hidden_width=32, args.v_depth=2, output_dim=1.
    state_dim, hidden_dim, depth = 32, 32, 2

    key = jax.random.PRNGKey(0)
    key, pk = jax.random.split(key)
    weights, biases = init_value_mlp_params(pk, state_dim, hidden_dim, depth)

    # bf16 MXU operands with f32 accumulation -> a few e-3 deviation vs. the
    # pure-f32 reference; tolerance is set accordingly.
    TOL = dict(atol=2e-2, rtol=2e-2)

    # Case 1: tiny batch (single grid step, 128-lane-aligned output row).
    key, sk = jax.random.split(key)
    s_small = jax.random.normal(sk, (8, state_dim), dtype=jnp.float32)
    out_small = jax.block_until_ready(value_mlp_forward(s_small, weights, biases))
    ref_small = value_mlp_reference(s_small, weights, biases)
    assert out_small.shape == (8, 1), out_small.shape
    assert jnp.allclose(out_small, ref_small, **TOL), \
        "mismatch vs reference (small batch)"

    # Case 2: multi-tile grid with batch padding (>= 2 steps kept so v7x's
    # two TensorCores both get work; exercises the pad/slice path and the
    # lane-dense [1, bt] output rows).
    key, sk = jax.random.split(key)
    s_big = jax.random.normal(sk, (1000, state_dim), dtype=jnp.float32)
    out_big = jax.block_until_ready(
        value_mlp_forward(s_big, weights, biases, batch_tile=4096))
    ref_big = value_mlp_reference(s_big, weights, biases)
    assert out_big.shape == (1000, 1), out_big.shape
    assert jnp.allclose(out_big, ref_big, **TOL), \
        "mismatch vs reference (tiled batch)"

    print("KERNEL_OK")
</pallas_src>

<mosaic_0001>
module attributes {stable_mosaic.version = 11 : i64} {
  func.func @_value_mlp_kernel(%arg0: i32, %arg1: memref<128x32xf32, #tpu.memory_space<vmem>>, %arg2: memref<32x32xf32, #tpu.memory_space<vmem>>, %arg3: memref<32x1xf32, #tpu.memory_space<vmem>>, %arg4: memref<32x32xf32, #tpu.memory_space<vmem>>, %arg5: memref<32x1xf32, #tpu.memory_space<vmem>>, %arg6: memref<1x32xf32, #tpu.memory_space<vmem>>, %arg7: memref<1x1xf32, #tpu.memory_space<vmem>>, %arg8: memref<1x128xf32, #tpu.memory_space<vmem>>) attributes {dimension_semantics = [#tpu.dimension_semantics<parallel>], iteration_bounds = array<i64: 1>, scalar_prefetch = 0 : i64, scratch_operands = 0 : i64, tpu.core_type = #tpu.core_type<tc>, window_params = [{transform_indices = @transform_0, window_bounds = array<i64: 128, 32>}, {pipeline_mode = #tpu.pipeline_mode<synchronous>, transform_indices = @transform_1, window_bounds = array<i64: 32, 32>}, {pipeline_mode = #tpu.pipeline_mode<synchronous>, transform_indices = @transform_2, window_bounds = array<i64: 32, 1>}, {pipeline_mode = #tpu.pipeline_mode<synchronous>, transform_indices = @transform_3, window_bounds = array<i64: 32, 32>}, {pipeline_mode = #tpu.pipeline_mode<synchronous>, transform_indices = @transform_4, window_bounds = array<i64: 32, 1>}, {pipeline_mode = #tpu.pipeline_mode<synchronous>, transform_indices = @transform_5, window_bounds = array<i64: 1, 32>}, {pipeline_mode = #tpu.pipeline_mode<synchronous>, transform_indices = @transform_6, window_bounds = array<i64: 1, 1>}, {transform_indices = @transform_7, window_bounds = array<i64: 1, 128>}]} {
    %c0 = arith.constant 0 : index
    %c0_0 = arith.constant 0 : index
    %0 = vector.load %arg1[%c0, %c0_0] : memref<128x32xf32, #tpu.memory_space<vmem>>, vector<128x32xf32>
    %1 = tpu.transpose %0, [1, 0] : vector<128x32xf32> -> vector<32x128xf32>
    %c0_1 = arith.constant 0 : index
    %c0_2 = arith.constant 0 : index
    %2 = vector.load %arg2[%c0_1, %c0_2] : memref<32x32xf32, #tpu.memory_space<vmem>>, vector<32x32xf32>
    %c0_3 = arith.constant 0 : index
    %c0_4 = arith.constant 0 : index
    %3 = vector.load %arg3[%c0_3, %c0_4] : memref<32x1xf32, #tpu.memory_space<vmem>>, vector<32x1xf32>
    %4 = arith.truncf %2 : vector<32x32xf32> to vector<32x32xbf16>
    %5 = arith.truncf %1 : vector<32x128xf32> to vector<32x128xbf16>
    %cst = arith.constant dense<0.000000e+00> : vector<32x128xf32>
    %6 = tpu.matmul %4, %5, %cst {dimension_numbers = #tpu.dot_dimension_numbers<[1], [0], [0], [1], [0, 0, 1, 1], [], []>} : vector<32x32xbf16>, vector<32x128xbf16>, vector<32x128xf32> -> vector<32x128xf32>
    %7 = vector.broadcast %3 : vector<32x1xf32> to vector<32x128xf32>
    %8 = arith.addf %6, %7 : vector<32x128xf32>
    %cst_5 = arith.constant 0.000000e+00 : f32
    %9 = vector.broadcast %cst_5 : f32 to vector<32x128xf32>
    %10 = arith.maximumf %8, %9 : vector<32x128xf32>
    %c0_6 = arith.constant 0 : index
    %c0_7 = arith.constant 0 : index
    %11 = vector.load %arg4[%c0_6, %c0_7] : memref<32x32xf32, #tpu.memory_space<vmem>>, vector<32x32xf32>
    %c0_8 = arith.constant 0 : index
    %c0_9 = arith.constant 0 : index
    %12 = vector.load %arg5[%c0_8, %c0_9] : memref<32x1xf32, #tpu.memory_space<vmem>>, vector<32x1xf32>
    %13 = arith.truncf %11 : vector<32x32xf32> to vector<32x32xbf16>
    %14 = arith.truncf %10 : vector<32x128xf32> to vector<32x128xbf16>
    %cst_10 = arith.constant dense<0.000000e+00> : vector<32x128xf32>
    %15 = tpu.matmul %13, %14, %cst_10 {dimension_numbers = #tpu.dot_dimension_numbers<[1], [0], [0], [1], [0, 0, 1, 1], [], []>} : vector<32x32xbf16>, vector<32x128xbf16>, vector<32x128xf32> -> vector<32x128xf32>
    %16 = vector.broadcast %12 : vector<32x1xf32> to vector<32x128xf32>
    %17 = arith.addf %15, %16 : vector<32x128xf32>
    %cst_11 = arith.constant 0.000000e+00 : f32
    %18 = vector.broadcast %cst_11 : f32 to vector<32x128xf32>
    %19 = arith.maximumf %17, %18 : vector<32x128xf32>
    %c0_12 = arith.constant 0 : index
    %c0_13 = arith.constant 0 : index
    %20 = vector.load %arg6[%c0_12, %c0_13] : memref<1x32xf32, #tpu.memory_space<vmem>>, vector<1x32xf32>
    %c0_14 = arith.constant 0 : index
    %c0_15 = arith.constant 0 : index
    %21 = vector.load %arg7[%c0_14, %c0_15] : memref<1x1xf32, #tpu.memory_space<vmem>>, vector<1x1xf32>
    %22 = arith.truncf %20 : vector<1x32xf32> to vector<1x32xbf16>
    %23 = arith.truncf %19 : vector<32x128xf32> to vector<32x128xbf16>
    %cst_16 = arith.constant dense<0.000000e+00> : vector<1x128xf32>
    %24 = tpu.matmul %22, %23, %cst_16 {dimension_numbers = #tpu.dot_dimension_numbers<[1], [0], [0], [1], [0, 0, 1, 1], [], []>} : vector<1x32xbf16>, vector<32x128xbf16>, vector<1x128xf32> -> vector<1x128xf32>
    %25 = vector.broadcast %21 : vector<1x1xf32> to vector<1x128xf32>
    %26 = arith.addf %24, %25 : vector<1x128xf32>
    %c0_17 = arith.constant 0 : index
    %c0_18 = arith.constant 0 : index
    %27 = vector.load %arg8[%c0_17, %c0_18] : memref<1x128xf32, #tpu.memory_space<vmem>>, vector<1x128xf32>
    tpu.vector_store %arg8[%c0_17, %c0_18], %26 {strides = array<i32>} : memref<1x128xf32, #tpu.memory_space<vmem>>, vector<1x128xf32>,
    return
  }
  func.func @transform_0(%arg0: i32) -> (i32, i32) {
    %c0_i32 = arith.constant 0 : i32
    %c0_i32_0 = arith.constant 0 : i32
    return %arg0, %c0_i32 : i32, i32
  }
  func.func @transform_1(%arg0: i32) -> (i32, i32) {
    %c0_i32 = arith.constant 0 : i32
    %c0_i32_0 = arith.constant 0 : i32
    %c0_i32_1 = arith.constant 0 : i32
    return %c0_i32, %c0_i32_0 : i32, i32
  }
  func.func @transform_2(%arg0: i32) -> (i32, i32) {
    %c0_i32 = arith.constant 0 : i32
    %c0_i32_0 = arith.constant 0 : i32
    %c0_i32_1 = arith.constant 0 : i32
    return %c0_i32, %c0_i32_0 : i32, i32
  }
  func.func @transform_3(%arg0: i32) -> (i32, i32) {
    %c0_i32 = arith.constant 0 : i32
    %c0_i32_0 = arith.constant 0 : i32
    %c0_i32_1 = arith.constant 0 : i32
    return %c0_i32, %c0_i32_0 : i32, i32
  }
  func.func @transform_4(%arg0: i32) -> (i32, i32) {
    %c0_i32 = arith.constant 0 : i32
    %c0_i32_0 = arith.constant 0 : i32
    %c0_i32_1 = arith.constant 0 : i32
    return %c0_i32, %c0_i32_0 : i32, i32
  }
  func.func @transform_5(%arg0: i32) -> (i32, i32) {
    %c0_i32 = arith.constant 0 : i32
    %c0_i32_0 = arith.constant 0 : i32
    %c0_i32_1 = arith.constant 0 : i32
    return %c0_i32, %c0_i32_0 : i32, i32
  }
  func.func @transform_6(%arg0: i32) -> (i32, i32) {
    %c0_i32 = arith.constant 0 : i32
    %c0_i32_0 = arith.constant 0 : i32
    %c0_i32_1 = arith.constant 0 : i32
    return %c0_i32, %c0_i32_0 : i32, i32
  }
  func.func @transform_7(%arg0: i32) -> (i32, i32) {
    %c0_i32 = arith.constant 0 : i32
    %c0_i32_0 = arith.constant 0 : i32
    return %c0_i32, %arg0 : i32, i32
  }
}

</mosaic_0001>

<llo_original>
// kernel: tpu_custom_call.1
$region0: #{tpu_custom_call.1}
  #allocation0 [shape = 'u32[]', space=smem, size = 0x4, offset = 0x4, fixed_abs, tag = 'smem constant byte address 0x4 - core index']
  #allocation1 [shape = 'u32[72,128]{1,0:T(1,128)}', space=vmem, size = 0x9000, scoped, tag = 'internal scratch']
  #allocation2 [shape = 'f32[1,1]{1,0:T(1,128)S(1)}', space=vmem, size = 0x200, scoped, tag = 'scoped memory for tpu_custom_call.1']
  %s0 = inlined_call_operand.vmem [shape: f32[128,32], index: 0, kind: input, shape index: {}]
  %s1 = inlined_call_operand.vmem [shape: f32[32,32], index: 1, kind: input, shape index: {}]
  %s2 = inlined_call_operand.vmem [shape: f32[32,1], index: 2, kind: input, shape index: {}]
  %s3 = inlined_call_operand.vmem [shape: f32[32,32], index: 3, kind: input, shape index: {}]
  %s4 = inlined_call_operand.vmem [shape: f32[32,1], index: 4, kind: input, shape index: {}]
  %s5 = inlined_call_operand.vmem [shape: f32[1,32], index: 5, kind: input, shape index: {}]
  %s6 = inlined_call_operand.<no memory space> [shape: f32[1,1], index: 6, kind: input, shape index: {}]
  %s7 = inlined_call_operand.hbm [shape: f32[1,128], index: 7, kind: output, shape index: {}]
  %s8 = sld [smem:[#allocation0]]
  $region38: #{tpu_custom_call.1} parent=0
    _
  %s10 = ssub.s32 1, %s8
  %s11 = scalar_select 0, %s10, %s8
  %v12 = vstv %s6
  %13 = vst [vmem:[#allocation2] sm:$0x1] %v12
  $region1: #{tpu_custom_call.1} parent=0
    #allocation3 [shape = 'u8[512]{0}', space=vmem, size = 0x400, scoped, tag = 'output window, operand 0, single buffered']
    #allocation4 [shape = 's32[1]{0}', space=sflag, size = 0x4, scoped, tag = 'scoped memory for tpu_custom_call.1']
    %14 = vsyncpa [#allocation4], 0
    // Predicated region
    $region2: #{tpu_custom_call.1} parent=1 // pred_check
      _
    $region3: #{tpu_custom_call.1} parent=1 // pred_check_branch
      %16 = sbr.rel (0) target = $region5
    $region4: #{tpu_custom_call.1} parent=1 // pred_region
      _
    $region5: #{tpu_custom_call.1} parent=1 // pred_fallthru
      _
    // Predicated region
    $region6: #{tpu_custom_call.1} parent=1 // pred_check
      _
    $region7: #{tpu_custom_call.1} parent=1 // pred_check_branch
      %18 = sbr.rel (0) target = $region9
    $region8: #{tpu_custom_call.1} parent=1 // pred_region
      _
    $region9: #{tpu_custom_call.1} parent=1 // pred_fallthru
      _
    // Predicated region
    $region10: #{tpu_custom_call.1} parent=1 // pred_check
      _
    $region11: #{tpu_custom_call.1} parent=1 // pred_check_branch
      %20 = sbr.rel (0) target = $region13
    $region12: #{tpu_custom_call.1} parent=1 // pred_region
      _
    $region13: #{tpu_custom_call.1} parent=1 // pred_fallthru
      _
    // Predicated region
    $region14: #{tpu_custom_call.1} parent=1 // pred_check
      _
    $region15: #{tpu_custom_call.1} parent=1 // pred_check_branch
      %22 = sbr.rel (0) target = $region17
    $region16: #{tpu_custom_call.1} parent=1 // pred_region
      _
    $region17: #{tpu_custom_call.1} parent=1 // pred_fallthru
      _
    // Predicated region
    $region18: #{tpu_custom_call.1} parent=1 // pred_check
      _
    $region19: #{tpu_custom_call.1} parent=1 // pred_check_branch
      %24 = sbr.rel (0) target = $region21
    $region20: #{tpu_custom_call.1} parent=1 // pred_region
      _
    $region21: #{tpu_custom_call.1} parent=1 // pred_fallthru
      _
    // Predicated region
    $region22: #{tpu_custom_call.1} parent=1 // pred_check
      _
    $region23: #{tpu_custom_call.1} parent=1 // pred_check_branch
      %26 = sbr.rel (0) target = $region25
    $region24: #{tpu_custom_call.1} parent=1 // pred_region
      _
    $region25: #{tpu_custom_call.1} parent=1 // pred_fallthru
      _
    // Predicated region
    $region26: #{tpu_custom_call.1} parent=1 // pred_check
      _
    $region27: #{tpu_custom_call.1} parent=1 // pred_check_branch
      %28 = sbr.rel (0) target = $region29
    $region28: #{tpu_custom_call.1} parent=1 // pred_region
      _
    $region29: #{tpu_custom_call.1} parent=1 // pred_fallthru
      _
    %v30 = vld [vmem:[%s0] sm:$0xff]
    %v31 = vld [vmem:[%s0 + $0x8] sm:$0xff]
    %v32 = vld [vmem:[%s0 + $0x10] sm:$0xff]
    %v33 = vld [vmem:[%s0 + $0x18] sm:$0xff]
    %v34 = vld [vmem:[%s0 + $0x20] sm:$0xff]
    %v35 = vld [vmem:[%s0 + $0x28] sm:$0xff]
    %v36 = vld [vmem:[%s0 + $0x30] sm:$0xff]
    %v37 = vld [vmem:[%s0 + $0x38] sm:$0xff]
    %v38 = vld [vmem:[%s0 + $0x40] sm:$0xff]
    %v39 = vld [vmem:[%s0 + $0x48] sm:$0xff]
    %v40 = vld [vmem:[%s0 + $0x50] sm:$0xff]
    %v41 = vld [vmem:[%s0 + $0x58] sm:$0xff]
    %v42 = vld [vmem:[%s0 + $0x60] sm:$0xff]
    %v43 = vld [vmem:[%s0 + $0x68] sm:$0xff]
    %v44 = vld [vmem:[%s0 + $0x70] sm:$0xff]
    %v45 = vld [vmem:[%s0 + $0x78] sm:$0xff]
    %46 = vxpose.xlu0.b32.start [1/16] %v30, 128
    %47 = vxpose.xlu0.b32.cont [2/16] %v31, 128
    %48 = vxpose.xlu0.b32.cont [3/16] %v32, 128
    %49 = vxpose.xlu0.b32.cont [4/16] %v33, 128
    %50 = vxpose.xlu0.b32.cont [5/16] %v34, 128
    %51 = vxpose.xlu0.b32.cont [6/16] %v35, 128
    %52 = vxpose.xlu0.b32.cont [7/16] %v36, 128
    %53 = vxpose.xlu0.b32.cont [8/16] %v37, 128
    %54 = vxpose.xlu0.b32.cont [9/16] %v38, 128
    %55 = vxpose.xlu0.b32.cont [10/16] %v39, 128
    %56 = vxpose.xlu0.b32.cont [11/16] %v40, 128
    %57 = vxpose.xlu0.b32.cont [12/16] %v41, 128
    %58 = vxpose.xlu0.b32.cont [13/16] %v42, 128
    %59 = vxpose.xlu0.b32.cont [14/16] %v43, 128
    %60 = vxpose.xlu0.b32.cont [15/16] %v44, 128
    %61 = vxpose.xlu0.b32.end [16/16] %v45, 128
    %v62 = vpop.trf.xlu0
    %v63 = vpop.trf.xlu0
    %v64 = vpop.trf.xlu0
    %v65 = vpop.trf.xlu0
    %v66 = vpop.trf.xlu0
    %v67 = vpop.trf.xlu0
    %v68 = vpop.trf.xlu0
    %v69 = vpop.trf.xlu0
    %v70 = vpop.trf.xlu0
    %v71 = vpop.trf.xlu0
    %v72 = vpop.trf.xlu0
    %v73 = vpop.trf.xlu0
    %v74 = vpop.trf.xlu0
    %v75 = vpop.trf.xlu0
    %v76 = vpop.trf.xlu0
    %v77 = vpop.trf.xlu0
    %v78 = vld [vmem:[%s1] sm:$0xff]
    %v79 = vld [vmem:[%s1 + $0x8] sm:$0xff]
    %v80 = vld [vmem:[%s1 + $0x10] sm:$0xff]
    %v81 = vld [vmem:[%s1 + $0x18] sm:$0xff]
    %v82 = vld [vmem:[%s2] sm:$0xff]
    %v83 = vld [vmem:[%s2 + $0x8] sm:$0xff]
    %v84 = vld [vmem:[%s2 + $0x10] sm:$0xff]
    %v85 = vld [vmem:[%s2 + $0x18] sm:$0xff]
    %v86 = vpack.c.bf16 %v79, %v78
    %v87 = vpack.c.bf16 %v81, %v80
    %v88 = vpack.c.bf16 %v63, %v62
    %v89 = vpack.c.bf16 %v65, %v64
    %91 = vset.pattern.permute.xlu0 0
    %92 = vperm.xlu0 %91, %v82
    %v93 = vpop.permute.xlu0 %92
    %96 = vset.pattern.permute.xlu0 0
    %97 = vperm.xlu0 %96, %v83
    %v98 = vpop.permute.xlu0 %97
    %101 = vset.pattern.permute.xlu0 0
    %102 = vperm.xlu0 %101, %v84
    %v103 = vpop.permute.xlu0 %102
    %106 = vset.pattern.permute.xlu0 0
    %107 = vperm.xlu0 %106, %v85
    %v108 = vpop.permute.xlu0 %107
    %vm110 = vcmask 261120
    %v112 = vsel %vm110, %v86, 0
    %v115 = vsel %vm110, %v87, 0
    %117 = vmatpush.bf16.msra.mxu0 0
    %118 = vmatpush.bf16.msra.mxu0 0
    %119 = vmatpush.bf16.msra.mxu0 0
    %120 = vmatpush.bf16.msra.mxu0 0
    %121 = vmatpush.bf16.msra.mxu0 0
    %122 = vmatpush.bf16.msra.mxu0 0
    %123 = vmatpush.bf16.msra.mxu0 %v89
    %124 = vmatpush.bf16.msra.mxu0 %v88
    %125 = vmatmul.bf16.gmra.mxu0 %v112
    %v126 = vpop.f32.mrf.mxu0
    %v127 = vadd.f32 %v93, %v126
    %v128 = vpop.f32.mrf.mxu0
    %v129 = vadd.f32 %v98, %v128
    %130 = vmatmul.bf16.gmra.mxu0 %v115
    %v131 = vpop.f32.mrf.mxu0
    %v132 = vadd.f32 %v103, %v131
    %v133 = vpop.f32.mrf.mxu0
    %v134 = vadd.f32 %v108, %v133
    %135 = vdwg.mxu0
    %v136 = vmax.f32 %v127, 0.0
    %v137 = vmax.f32 %v129, 0.0
    %v138 = vmax.f32 %v132, 0.0
    %v139 = vmax.f32 %v134, 0.0
    %v140 = vld [vmem:[%s3] sm:$0xff]
    %v141 = vld [vmem:[%s3 + $0x8] sm:$0xff]
    %v142 = vld [vmem:[%s3 + $0x10] sm:$0xff]
    %v143 = vld [vmem:[%s3 + $0x18] sm:$0xff]
    %v144 = vld [vmem:[%s4] sm:$0xff]
    %v145 = vld [vmem:[%s4 + $0x8] sm:$0xff]
    %v146 = vld [vmem:[%s4 + $0x10] sm:$0xff]
    %v147 = vld [vmem:[%s4 + $0x18] sm:$0xff]
    %v148 = vpack.c.bf16 %v141, %v140
    %v149 = vpack.c.bf16 %v143, %v142
    %v150 = vpack.c.bf16 %v137, %v136
    %v151 = vpack.c.bf16 %v139, %v138
    %153 = vset.pattern.permute.xlu0 0
    %154 = vperm.xlu0 %153, %v144
    %v155 = vpop.permute.xlu0 %154
    %158 = vset.pattern.permute.xlu0 0
    %159 = vperm.xlu0 %158, %v145
    %v160 = vpop.permute.xlu0 %159
    %163 = vset.pattern.permute.xlu0 0
    %164 = vperm.xlu0 %163, %v146
    %v165 = vpop.permute.xlu0 %164
    %168 = vset.pattern.permute.xlu0 0
    %169 = vperm.xlu0 %168, %v147
    %v170 = vpop.permute.xlu0 %169
    %v173 = vsel %vm110, %v148, 0
    %v176 = vsel %vm110, %v149, 0
    %178 = vmatpush.bf16.msra.mxu0 0
    %179 = vmatpush.bf16.msra.mxu0 0
    %180 = vmatpush.bf16.msra.mxu0 0
    %181 = vmatpush.bf16.msra.mxu0 0
    %182 = vmatpush.bf16.msra.mxu0 0
    %183 = vmatpush.bf16.msra.mxu0 0
    %184 = vmatpush.bf16.msra.mxu0 %v151
    %185 = vmatpush.bf16.msra.mxu0 %v150
    %186 = vmatmul.bf16.gmra.mxu0 %v173
    %v187 = vpop.f32.mrf.mxu0
    %v188 = vadd.f32 %v155, %v187
    %v189 = vpop.f32.mrf.mxu0
    %v190 = vadd.f32 %v160, %v189
    %191 = vmatmul.bf16.gmra.mxu0 %v176
    %v192 = vpop.f32.mrf.mxu0
    %v193 = vadd.f32 %v165, %v192
    %v194 = vpop.f32.mrf.mxu0
    %v195 = vadd.f32 %v170, %v194
    %196 = vdwg.mxu0
    %v197 = vmax.f32 %v188, 0.0
    %v198 = vmax.f32 %v190, 0.0
    %v199 = vmax.f32 %v193, 0.0
    %v200 = vmax.f32 %v195, 0.0
    %v201 = vld [vmem:[%s5] sm:$0x1]
    %v202 = vld [vmem:[#allocation2] sm:$0x1]
    %v203 = vpack.c.bf16 %v201, %v201
    %v204 = vpack.c.bf16 %v198, %v197
    %v205 = vpack.c.bf16 %v200, %v199
    %207 = vset.pattern.permute.xlu0 0
    %208 = vperm.xlu0 %207, %v202
    %v209 = vpop.permute.xlu0 %208
    %v211 = vperm.slane %v209, 0
    %v213 = vsel %vm110, %v203, 0
    %215 = vmatpush.bf16.msra.mxu0 0
    %216 = vmatpush.bf16.msra.mxu0 0
    %217 = vmatpush.bf16.msra.mxu0 0
    %218 = vmatpush.bf16.msra.mxu0 0
    %219 = vmatpush.bf16.msra.mxu0 0
    %220 = vmatpush.bf16.msra.mxu0 0
    %221 = vmatpush.bf16.msra.mxu0 %v205
    %222 = vmatpush.bf16.msra.mxu0 %v204
    %223 = vmatmul.bf16.gmra.mxu0 %v213
    %v224 = vpop.f32.mrf.mxu0
    %v225 = vadd.f32 %v211, %v224
    %v226 = vpop.f32.mrf.mxu0
    %227 = vdwg.mxu0
    %228 = vst [vmem:[#allocation3] sm:$0x1] %v225
    // Predicated region
    $region30: #{tpu_custom_call.1} parent=1 // pred_check
      _
    $region31: #{tpu_custom_call.1} parent=1 // pred_check_branch
      %230 = sbr.rel (0) target = $region33
    $region32: #{tpu_custom_call.1} parent=1 // pred_region
      %232 = vsyncadd [#allocation4], 0
      %s234 = sshll.u32 [#allocation3], 4
      %s235 = int_to_ptr.vmem [resolvable:$true] %s234
      %s236 = sshll.u32 %s7, 4
      %s237 = int_to_ptr.hbm [resolvable:$true] %s236
      %239 = dma.vmem_to_hbm [thread:$0]  %s235, 16, %s237, [#allocation4]
    $region33: #{tpu_custom_call.1} parent=1 // pred_fallthru
      _
    // Predicated region
    $region34: #{tpu_custom_call.1} parent=1 // pred_check
      _
    $region35: #{tpu_custom_call.1} parent=1 // pred_check_branch
      %241 = sbr.rel (0) target = $region37
    $region36: #{tpu_custom_call.1} parent=1 // pred_region
      %243 = dma.done [#allocation4], 16
    $region37: #{tpu_custom_call.1} parent=1 // pred_fallthru
      _
    %244 = vsyncpa [#allocation4], 1

</llo_original>
